<compile_context>
chip_gen: v7x
topology: tpu7x:2x2x1
jax: 0.10.0
libtpu: 0.0.40
codegen_flags: <defaults>
</compile_context>

<pallas_src>
import functools
import math

import jax
import jax.numpy as jnp
from jax.experimental import pallas as pl
from jax.experimental.pallas import tpu as pltpu


# ----------------------------------------------------------------------------
# Kernel bodies: one (tm, in_features) row-tile per grid step.
# ----------------------------------------------------------------------------
def _te_compute(ho_ref, hc_ref, wo_ref, wc_ref, b_ref, o_ref, half, lane_aligned):
    # Two MXU matmuls with f32 accumulation.
    t_o = jnp.dot(ho_ref[...], wo_ref[...], preferred_element_type=jnp.float32)
    t_c = jnp.dot(hc_ref[...], wc_ref[...], preferred_element_type=jnp.float32)

    if lane_aligned:
        # tanh is elementwise, so tanh(concat(a, b)) == concat(tanh(a), tanh(b));
        # write the halves into disjoint, 128-aligned lane ranges (unmasked vst).
        out_o = jnp.tanh(t_o)
        out_c = jnp.tanh(t_c)
        if b_ref is not None:
            out_o = out_o + b_ref[:, :half]
            out_c = out_c + b_ref[:, half:]
        o_ref[:, :half] = out_o.astype(o_ref.dtype)
        o_ref[:, half:] = out_c.astype(o_ref.dtype)
    else:
        # Non-128-aligned split: do the concat in registers and issue a single
        # full-width store instead of two masked partial stores.
        out = jnp.tanh(jnp.concatenate([t_o, t_c], axis=1))
        if b_ref is not None:
            out = out + b_ref[...]
        o_ref[...] = out.astype(o_ref.dtype)


def _te_kernel_bias(ho_ref, hc_ref, wo_ref, wc_ref, b_ref, o_ref, *, half, lane_aligned):
    _te_compute(ho_ref, hc_ref, wo_ref, wc_ref, b_ref, o_ref, half, lane_aligned)


def _te_kernel_nobias(ho_ref, hc_ref, wo_ref, wc_ref, o_ref, *, half, lane_aligned):
    _te_compute(ho_ref, hc_ref, wo_ref, wc_ref, None, o_ref, half, lane_aligned)


# ----------------------------------------------------------------------------
# Row-tile selection: as big as the VMEM budget allows, >= 2 grid steps when
# possible (v7x megacore), always a multiple of 8 (sublane).
# ----------------------------------------------------------------------------
def _pick_row_tile(M, in_features, out_features, itemsize, target):
    budget = 12 * 1024 * 1024  # safe under v5e's 16 MiB scoped-VMEM default
    # Resident weights + bias (conservatively assume double-buffered).
    resident = 2 * (in_features * out_features * itemsize + out_features * 4)
    # (h_o + h_c + out) tiles, double-buffered by the pipeline.
    per_row = (2 * in_features + out_features) * itemsize * 2
    max_rows = max(8, (budget - resident) // max(per_row, 1))

    tm = min(target, M, max_rows)
    if M >= 16:
        # Guarantee >= 2 grid steps so both v7x TensorCores get work.
        tm = min(tm, -(-M // 2))
    tm = max(8, -(-tm // 8) * 8)  # round up to a multiple of 8
    return int(tm)


# ----------------------------------------------------------------------------
# Wrapper: row-tiled grid, optional bf16 compute path, padded tail handling.
# ----------------------------------------------------------------------------
def temporal_encoding(h_o, h_c, weight_o, weight_c, bias=None, *,
                      block_m=1024, compute_dtype=None):
    M, in_features = h_o.shape
    assert h_c.shape == (M, in_features)
    half = weight_o.shape[1]
    half_c = weight_c.shape[1]
    assert weight_o.shape == (in_features, half)
    assert weight_c.shape == (in_features, half_c)
    out_features = half + half_c

    # Optional bf16 cast (HBM-bound kernel -> ~2x fewer bytes moved).
    cdt = jnp.dtype(compute_dtype) if compute_dtype is not None else h_o.dtype
    h_o = h_o.astype(cdt)
    h_c = h_c.astype(cdt)
    weight_o = weight_o.astype(cdt)
    weight_c = weight_c.astype(cdt)
    out_dtype = cdt
    itemsize = jnp.dtype(cdt).itemsize

    tm = _pick_row_tile(M, in_features, out_features, itemsize, block_m)
    grid_m = pl.cdiv(M, tm)
    m_pad = grid_m * tm
    if m_pad != M:
        pad = m_pad - M
        h_o = jnp.pad(h_o, ((0, pad), (0, 0)))
        h_c = jnp.pad(h_c, ((0, pad), (0, 0)))

    use_bias = bias is not None
    lane_aligned = (half % 128 == 0)

    in_specs = [
        pl.BlockSpec((tm, in_features), lambda i: (i, 0)),          # h_o tile
        pl.BlockSpec((tm, in_features), lambda i: (i, 0)),          # h_c tile
        pl.BlockSpec((in_features, half), lambda i: (0, 0)),        # W_o (resident)
        pl.BlockSpec((in_features, half_c), lambda i: (0, 0)),      # W_c (resident)
    ]
    operands = [h_o, h_c, weight_o, weight_c]
    if use_bias:
        assert bias.shape == (out_features,)
        bias2d = bias.reshape(1, out_features).astype(jnp.float32)
        in_specs.append(pl.BlockSpec((1, out_features), lambda i: (0, 0)))
        operands.append(bias2d)
        kernel = functools.partial(_te_kernel_bias, half=half, lane_aligned=lane_aligned)
    else:
        kernel = functools.partial(_te_kernel_nobias, half=half, lane_aligned=lane_aligned)

    bytes_accessed = (
        2 * m_pad * in_features * itemsize            # h_o, h_c
        + in_features * out_features * itemsize       # W_o, W_c
        + m_pad * out_features * jnp.dtype(out_dtype).itemsize  # output
        + (out_features * 4 if use_bias else 0)       # bias
    )
    cost = pl.CostEstimate(
        flops=2 * m_pad * in_features * out_features,
        transcendentals=m_pad * out_features,
        bytes_accessed=int(bytes_accessed),
    )

    out = pl.pallas_call(
        kernel,
        out_shape=jax.ShapeDtypeStruct((m_pad, out_features), out_dtype),
        grid_spec=pltpu.PrefetchScalarGridSpec(
            num_scalar_prefetch=0,
            grid=(grid_m,),
            in_specs=in_specs,
            out_specs=pl.BlockSpec((tm, out_features), lambda i: (i, 0)),
        ),
        compiler_params=pltpu.CompilerParams(
            dimension_semantics=("parallel",),  # megacore-shardable on v7x
        ),
        cost_estimate=cost,
    )(*operands)

    return out[:M] if m_pad != M else out


# ----------------------------------------------------------------------------
# Demo / correctness checks at small, lane-dense shapes.
# ----------------------------------------------------------------------------
if __name__ == "__main__":
    key = jax.random.PRNGKey(0)
    in_features = 256      # half = 128 keeps every store lane-dense
    half = in_features // 2

    k1, k2, k3, k4, k5, k6, k7 = jax.random.split(key, 7)

    # xavier_uniform_(gain=1.667) equivalents.
    gain = 1.667
    limit = gain * math.sqrt(6.0 / (in_features + half))
    weight_o = jax.random.uniform(k3, (in_features, half), jnp.float32, -limit, limit)
    weight_c = jax.random.uniform(k4, (in_features, half), jnp.float32, -limit, limit)
    stdv = 1.0 / math.sqrt(in_features)
    bias = jax.random.uniform(k5, (in_features,), jnp.float32, -stdv, stdv)

    def reference(h_o, h_c, w_o, w_c, b):
        out = jnp.tanh(
            jnp.concatenate(
                [jnp.dot(h_o, w_o, precision=jax.lax.Precision.HIGHEST),
                 jnp.dot(h_c, w_c, precision=jax.lax.Precision.HIGHEST)],
                axis=1,
            )
        )
        return out + b if b is not None else out

    # --- Case 1: f32, even M, bias; tile picker yields grid=(2,) (tm=128). ---
    M = 256
    h_o = jax.random.normal(k1, (M, in_features), jnp.float32)
    h_c = jax.random.normal(k2, (M, in_features), jnp.float32)
    out = temporal_encoding(h_o, h_c, weight_o, weight_c, bias)
    jax.block_until_ready(out)
    ref = reference(h_o, h_c, weight_o, weight_c, bias)
    assert out.shape == (M, in_features)
    assert bool(jnp.all(jnp.isfinite(out)))
    assert bool(jnp.allclose(out, ref, atol=2e-2, rtol=2e-2)), float(
        jnp.max(jnp.abs(out - ref)))

    # --- Case 2: awkward M (padded tail), no bias (bias operand dropped). ---
    M2 = 200
    h_o2 = jax.random.normal(k6, (M2, in_features), jnp.float32)
    h_c2 = jax.random.normal(k7, (M2, in_features), jnp.float32)
    out2 = temporal_encoding(h_o2, h_c2, weight_o, weight_c, None)
    jax.block_until_ready(out2)
    ref2 = reference(h_o2, h_c2, weight_o, weight_c, None)
    assert out2.shape == (M2, in_features)
    assert bool(jnp.allclose(out2, ref2, atol=2e-2, rtol=2e-2)), float(
        jnp.max(jnp.abs(out2 - ref2)))

    # --- Case 3: bf16 compute path (HBM-bandwidth win on v6e/v7x). ---
    out3 = temporal_encoding(h_o, h_c, weight_o, weight_c, bias,
                             compute_dtype=jnp.bfloat16)
    jax.block_until_ready(out3)
    assert out3.dtype == jnp.bfloat16
    assert out3.shape == (M, in_features)
    assert bool(jnp.all(jnp.isfinite(out3.astype(jnp.float32))))
    assert bool(jnp.allclose(out3.astype(jnp.float32), ref, atol=6e-2, rtol=6e-2)), float(
        jnp.max(jnp.abs(out3.astype(jnp.float32) - ref)))

    print("KERNEL_OK")
</pallas_src>

<mosaic_0001>
module attributes {stable_mosaic.version = 11 : i64} {
  func.func @_te_kernel_bias(%arg0: i32, %arg1: memref<128x256xf32, #tpu.memory_space<vmem>>, %arg2: memref<128x256xf32, #tpu.memory_space<vmem>>, %arg3: memref<256x128xf32, #tpu.memory_space<vmem>>, %arg4: memref<256x128xf32, #tpu.memory_space<vmem>>, %arg5: memref<1x256xf32, #tpu.memory_space<vmem>>, %arg6: memref<128x256xf32, #tpu.memory_space<vmem>>) attributes {dimension_semantics = [#tpu.dimension_semantics<parallel>], iteration_bounds = array<i64: 2>, scalar_prefetch = 0 : i64, scratch_operands = 0 : i64, tpu.core_type = #tpu.core_type<tc>, window_params = [{transform_indices = @transform_0, window_bounds = array<i64: 128, 256>}, {transform_indices = @transform_1, window_bounds = array<i64: 128, 256>}, {pipeline_mode = #tpu.pipeline_mode<synchronous>, transform_indices = @transform_2, window_bounds = array<i64: 256, 128>}, {pipeline_mode = #tpu.pipeline_mode<synchronous>, transform_indices = @transform_3, window_bounds = array<i64: 256, 128>}, {pipeline_mode = #tpu.pipeline_mode<synchronous>, transform_indices = @transform_4, window_bounds = array<i64: 1, 256>}, {transform_indices = @transform_5, window_bounds = array<i64: 128, 256>}]} {
    %c0 = arith.constant 0 : index
    %c0_0 = arith.constant 0 : index
    %0 = vector.load %arg1[%c0, %c0_0] : memref<128x256xf32, #tpu.memory_space<vmem>>, vector<128x256xf32>
    %c0_1 = arith.constant 0 : index
    %c0_2 = arith.constant 0 : index
    %1 = vector.load %arg3[%c0_1, %c0_2] : memref<256x128xf32, #tpu.memory_space<vmem>>, vector<256x128xf32>
    %cst = arith.constant dense<0.000000e+00> : vector<128x128xf32>
    %2 = tpu.matmul %0, %1, %cst {dimension_numbers = #tpu.dot_dimension_numbers<[1], [0], [0], [1], [0, 0, 1, 1], [], []>} : vector<128x256xf32>, vector<256x128xf32>, vector<128x128xf32> -> vector<128x128xf32>
    %c0_3 = arith.constant 0 : index
    %c0_4 = arith.constant 0 : index
    %3 = vector.load %arg2[%c0_3, %c0_4] : memref<128x256xf32, #tpu.memory_space<vmem>>, vector<128x256xf32>
    %c0_5 = arith.constant 0 : index
    %c0_6 = arith.constant 0 : index
    %4 = vector.load %arg4[%c0_5, %c0_6] : memref<256x128xf32, #tpu.memory_space<vmem>>, vector<256x128xf32>
    %cst_7 = arith.constant dense<0.000000e+00> : vector<128x128xf32>
    %5 = tpu.matmul %3, %4, %cst_7 {dimension_numbers = #tpu.dot_dimension_numbers<[1], [0], [0], [1], [0, 0, 1, 1], [], []>} : vector<128x256xf32>, vector<256x128xf32>, vector<128x128xf32> -> vector<128x128xf32>
    %6 = math.tanh %2 : vector<128x128xf32>
    %7 = math.tanh %5 : vector<128x128xf32>
    %c0_8 = arith.constant 0 : index
    %c0_9 = arith.constant 0 : index
    %8 = vector.load %arg5[%c0_8, %c0_9] : memref<1x256xf32, #tpu.memory_space<vmem>>, vector<1x128xf32>
    %9 = vector.broadcast %8 : vector<1x128xf32> to vector<128x128xf32>
    %10 = arith.addf %6, %9 : vector<128x128xf32>
    %c0_10 = arith.constant 0 : index
    %c128 = arith.constant 128 : index
    %11 = vector.load %arg5[%c0_10, %c128] : memref<1x256xf32, #tpu.memory_space<vmem>>, vector<1x128xf32>
    %12 = vector.broadcast %11 : vector<1x128xf32> to vector<128x128xf32>
    %13 = arith.addf %7, %12 : vector<128x128xf32>
    %c0_11 = arith.constant 0 : index
    %c0_12 = arith.constant 0 : index
    %14 = vector.load %arg6[%c0_11, %c0_12] : memref<128x256xf32, #tpu.memory_space<vmem>>, vector<128x128xf32>
    tpu.vector_store %arg6[%c0_11, %c0_12], %10 {strides = array<i32>} : memref<128x256xf32, #tpu.memory_space<vmem>>, vector<128x128xf32>,
    %c0_13 = arith.constant 0 : index
    %c128_14 = arith.constant 128 : index
    %15 = vector.load %arg6[%c0_13, %c128_14] : memref<128x256xf32, #tpu.memory_space<vmem>>, vector<128x128xf32>
    tpu.vector_store %arg6[%c0_13, %c128_14], %13 {strides = array<i32>} : memref<128x256xf32, #tpu.memory_space<vmem>>, vector<128x128xf32>,
    return
  }
  func.func @transform_0(%arg0: i32) -> (i32, i32) {
    %c0_i32 = arith.constant 0 : i32
    %c0_i32_0 = arith.constant 0 : i32
    return %arg0, %c0_i32 : i32, i32
  }
  func.func @transform_1(%arg0: i32) -> (i32, i32) {
    %c0_i32 = arith.constant 0 : i32
    %c0_i32_0 = arith.constant 0 : i32
    return %arg0, %c0_i32 : i32, i32
  }
  func.func @transform_2(%arg0: i32) -> (i32, i32) {
    %c0_i32 = arith.constant 0 : i32
    %c0_i32_0 = arith.constant 0 : i32
    %c0_i32_1 = arith.constant 0 : i32
    return %c0_i32, %c0_i32_0 : i32, i32
  }
  func.func @transform_3(%arg0: i32) -> (i32, i32) {
    %c0_i32 = arith.constant 0 : i32
    %c0_i32_0 = arith.constant 0 : i32
    %c0_i32_1 = arith.constant 0 : i32
    return %c0_i32, %c0_i32_0 : i32, i32
  }
  func.func @transform_4(%arg0: i32) -> (i32, i32) {
    %c0_i32 = arith.constant 0 : i32
    %c0_i32_0 = arith.constant 0 : i32
    %c0_i32_1 = arith.constant 0 : i32
    return %c0_i32, %c0_i32_0 : i32, i32
  }
  func.func @transform_5(%arg0: i32) -> (i32, i32) {
    %c0_i32 = arith.constant 0 : i32
    %c0_i32_0 = arith.constant 0 : i32
    return %arg0, %c0_i32 : i32, i32
  }
}

</mosaic_0001>

<llo_original>
// kernel: tpu_custom_call.1
$region0: #{tpu_custom_call.1}
  #allocation0 [shape = 'u32[]', space=smem, size = 0x4, offset = 0x4, fixed_abs, tag = 'smem constant byte address 0x4 - core index']
  #allocation1 [shape = 'u32[144,128]{1,0:T(1,128)}', space=vmem, size = 0x12000, scoped, tag = 'internal scratch']
  %s0 = inlined_call_operand.hbm [shape: f32[256,256], index: 0, kind: input, shape index: {}]
  %s1 = inlined_call_operand.hbm [shape: f32[256,256], index: 1, kind: input, shape index: {}]
  %s2 = inlined_call_operand.hbm [shape: f32[256,128], index: 2, kind: input, shape index: {}]
  %s3 = inlined_call_operand.hbm [shape: f32[256,128], index: 3, kind: input, shape index: {}]
  %s4 = inlined_call_operand.vmem [shape: f32[1,256], index: 4, kind: input, shape index: {}]
  %s5 = inlined_call_operand.hbm [shape: f32[256,256], index: 5, kind: output, shape index: {}]
  %s6 = sld [smem:[#allocation0]]
  $region69: #{tpu_custom_call.1} parent=0
    _
  %s8 = ssub.s32 1, %s6
  %s9 = scalar_select 0, %s8, %s6
  $region1: #{tpu_custom_call.1} parent=0
    #allocation2 [shape = 'u8[262144]{0}', space=vmem, size = 0x40000, scoped, tag = 'input window, operand 0']
    #allocation3 [shape = 's32[2]{0}', space=sflag, size = 0x8, scoped, tag = 'scoped memory for tpu_custom_call.1']
    #allocation4 [shape = 's32[2]{0}', space=sflag, size = 0x8, scoped, tag = 'scoped memory for tpu_custom_call.1']
    #allocation5 [shape = 'u8[262144]{0}', space=vmem, size = 0x40000, scoped, tag = 'input window, operand 1']
    #allocation6 [shape = 's32[2]{0}', space=sflag, size = 0x8, scoped, tag = 'scoped memory for tpu_custom_call.1']
    #allocation7 [shape = 'u8[131072]{0}', space=vmem, size = 0x20000, scoped, tag = 'input window, operand 2, single buffered']
    #allocation8 [shape = 'u8[131072]{0}', space=vmem, size = 0x20000, scoped, tag = 'input window, operand 3, single buffered']
    #allocation9 [shape = 's32[1]{0}', space=sflag, size = 0x4, scoped, tag = 'scoped memory for tpu_custom_call.1']
    #allocation10 [shape = 'u8[262144]{0}', space=vmem, size = 0x40000, scoped, tag = 'output window, operand 0']
    %10 = vsyncpa [#allocation3], 0
    %s11 = scalar_lea.sflag [#allocation3], 1
    %12 = vsyncpa %s11, 0
    %13 = vsyncpa [#allocation6], 0
    %s14 = scalar_lea.sflag [#allocation6], 1
    %15 = vsyncpa %s14, 0
    %16 = vsyncpa [#allocation9], 0
    %17 = vsyncpa [#allocation4], 0
    %s18 = scalar_lea.sflag [#allocation4], 1
    %19 = vsyncpa %s18, 0
    loop: start=0, step=1, limit=4
    $region2: #{tpu_custom_call.1} parent=1 // loop_pre_header
      _
    $region3: #{tpu_custom_call.1} parent=1 // loop_header
      %s21 = sphi 0, %s25
      %p22 = scmp.ge.s32.totalorder %s21, 4
      %s31 = sphi 0, %s33
      %s34 = sphi 0, %s31
      %s35 = sphi 0, %s34
      %s51 = sphi 0, %s35
      %s57 = sphi 0, %s59
      %s60 = sphi 0, %s57
      %s61 = sphi 0, %s60
      %s77 = sphi 0, %s61
      %s81 = sphi 0, %s81
      %s83 = sphi 0, %s81
      %s84 = sphi 0, %s83
      %s98 = sphi 0, %s84
      %s102 = sphi 0, %s102
      %s104 = sphi 0, %s102
      %s105 = sphi 0, %s104
      %s119 = sphi 0, %s105
      %s123 = sphi 0, %s123
      %s125 = sphi 0, %s123
      %s126 = sphi 0, %s125
      %s140 = sphi 0, %s126
      %s146 = sphi 0, %s148
      %s149 = sphi 0, %s146
      %s150 = sphi 0, %s149
      %s166 = sphi 0, %s150
    $region4: #{tpu_custom_call.1} parent=1 // loop_header_branch
      %24 = sbr.rel (%p22) target = $region8
    $region5: #{tpu_custom_call.1} parent=1 // loop_body
      %s26 = ssub.s32 %s21, 1
      %s27 = ssub.s32 %s21, 2
      %s28 = sadd.s32 %s21, 1
      %s29 = ssub.s32 %s21, %s28
      %p30 = scmp.eq.s32.totalorder %s29, 0
      %s32 = sadd.s32 %s31, 1
      %s33 = scalar_select %p30, %s31, %s32
      %p36 = pneg %p30
      %p37 = scmp.eq.s32.totalorder %s21, 1
      %p38 = por %p36, %p37
      %p39 = scmp.ne.s32.totalorder %s31, %s34
      %p40 = scmp.eq.s32.totalorder %s21, 0
      %p41 = por %p39, %p40
      %p42 = scmp.ne.s32.totalorder %s31, %s34
      %p43 = scmp.eq.s32.totalorder %s26, 1
      %p44 = por %p42, %p43
      %p45 = scmp.ne.s32.totalorder %s34, %s35
      %p46 = scmp.eq.s32.totalorder %s26, 0
      %p47 = por %p45, %p46
      %p48 = scmp.ne.s32.totalorder %s34, %s35
      %p49 = scmp.eq.s32.totalorder %s27, 1
      %p50 = por %p48, %p49
      %p52 = scmp.ne.s32.totalorder %s35, %s51
      %p53 = scmp.eq.s32.totalorder %s27, 0
      %p54 = por %p52, %p53
      %s55 = ssub.s32 %s21, %s28
      %p56 = scmp.eq.s32.totalorder %s55, 0
      %s58 = sadd.s32 %s57, 1
      %s59 = scalar_select %p56, %s57, %s58
      %p62 = pneg %p56
      %p63 = scmp.eq.s32.totalorder %s21, 1
      %p64 = por %p62, %p63
      %p65 = scmp.ne.s32.totalorder %s57, %s60
      %p66 = scmp.eq.s32.totalorder %s21, 0
      %p67 = por %p65, %p66
      %p68 = scmp.ne.s32.totalorder %s57, %s60
      %p69 = scmp.eq.s32.totalorder %s26, 1
      %p70 = por %p68, %p69
      %p71 = scmp.ne.s32.totalorder %s60, %s61
      %p72 = scmp.eq.s32.totalorder %s26, 0
      %p73 = por %p71, %p72
      %p74 = scmp.ne.s32.totalorder %s60, %s61
      %p75 = scmp.eq.s32.totalorder %s27, 1
      %p76 = por %p74, %p75
      %p78 = scmp.ne.s32.totalorder %s61, %s77
      %p79 = scmp.eq.s32.totalorder %s27, 0
      %p80 = por %p78, %p79
      %s82 = sadd.s32 %s81, 1
      %p85 = scmp.eq.s32.totalorder %s21, 1
      %p86 = scmp.ne.s32.totalorder %s81, %s83
      %p87 = scmp.eq.s32.totalorder %s21, 0
      %p88 = por %p86, %p87
      %p89 = scmp.ne.s32.totalorder %s81, %s83
      %p90 = scmp.eq.s32.totalorder %s26, 1
      %p91 = por %p89, %p90
      %p92 = scmp.ne.s32.totalorder %s83, %s84
      %p93 = scmp.eq.s32.totalorder %s26, 0
      %p94 = por %p92, %p93
      %p95 = scmp.ne.s32.totalorder %s83, %s84
      %p96 = scmp.eq.s32.totalorder %s27, 1
      %p97 = por %p95, %p96
      %p99 = scmp.ne.s32.totalorder %s84, %s98
      %p100 = scmp.eq.s32.totalorder %s27, 0
      %p101 = por %p99, %p100
      %s103 = sadd.s32 %s102, 1
      %p106 = scmp.eq.s32.totalorder %s21, 1
      %p107 = scmp.ne.s32.totalorder %s102, %s104
      %p108 = scmp.eq.s32.totalorder %s21, 0
      %p109 = por %p107, %p108
      %p110 = scmp.ne.s32.totalorder %s102, %s104
      %p111 = scmp.eq.s32.totalorder %s26, 1
      %p112 = por %p110, %p111
      %p113 = scmp.ne.s32.totalorder %s104, %s105
      %p114 = scmp.eq.s32.totalorder %s26, 0
      %p115 = por %p113, %p114
      %p116 = scmp.ne.s32.totalorder %s104, %s105
      %p117 = scmp.eq.s32.totalorder %s27, 1
      %p118 = por %p116, %p117
      %p120 = scmp.ne.s32.totalorder %s105, %s119
      %p121 = scmp.eq.s32.totalorder %s27, 0
      %p122 = por %p120, %p121
      %s124 = sadd.s32 %s123, 1
      %p127 = scmp.eq.s32.totalorder %s21, 1
      %p128 = scmp.ne.s32.totalorder %s123, %s125
      %p129 = scmp.eq.s32.totalorder %s21, 0
      %p130 = por %p128, %p129
      %p131 = scmp.ne.s32.totalorder %s123, %s125
      %p132 = scmp.eq.s32.totalorder %s26, 1
      %p133 = por %p131, %p132
      %p134 = scmp.ne.s32.totalorder %s125, %s126
      %p135 = scmp.eq.s32.totalorder %s26, 0
      %p136 = por %p134, %p135
      %p137 = scmp.ne.s32.totalorder %s125, %s126
      %p138 = scmp.eq.s32.totalorder %s27, 1
      %p139 = por %p137, %p138
      %p141 = scmp.ne.s32.totalorder %s126, %s140
      %p142 = scmp.eq.s32.totalorder %s27, 0
      %p143 = por %p141, %p142
      %s144 = ssub.s32 %s21, %s28
      %p145 = scmp.eq.s32.totalorder %s144, 0
      %s147 = sadd.s32 %s146, 1
      %s148 = scalar_select %p145, %s146, %s147
      %p151 = pneg %p145
      %p152 = scmp.eq.s32.totalorder %s21, 1
      %p153 = por %p151, %p152
      %p154 = scmp.ne.s32.totalorder %s146, %s149
      %p155 = scmp.eq.s32.totalorder %s21, 0
      %p156 = por %p154, %p155
      %p157 = scmp.ne.s32.totalorder %s146, %s149
      %p158 = scmp.eq.s32.totalorder %s26, 1
      %p159 = por %p157, %p158
      %p160 = scmp.ne.s32.totalorder %s149, %s150
      %p161 = scmp.eq.s32.totalorder %s26, 0
      %p162 = por %p160, %p161
      %p163 = scmp.ne.s32.totalorder %s149, %s150
      %p164 = scmp.eq.s32.totalorder %s27, 1
      %p165 = por %p163, %p164
      %p167 = scmp.ne.s32.totalorder %s150, %s166
      %p168 = scmp.eq.s32.totalorder %s27, 0
      %p169 = por %p167, %p168
      %p170 = scmp.le.s32.totalorder 1, %s21
      %p171 = scmp.lt.s32.totalorder %s21, 3
      %p172 = pnand %p170, %p171
      %p173 = pneg %p172
      // Predicated region
      $region9: #{tpu_custom_call.1} parent=5 // pred_check
        _
      $region10: #{tpu_custom_call.1} parent=5 // pred_check_branch
        %175 = sbr.rel (%p172) target = $region12
      $region11: #{tpu_custom_call.1} parent=5 // pred_region
        %s176 = ssub.s32 %s21, 1
        // Predicated region
        $region13: #{tpu_custom_call.1} parent=11 // pred_check
          %p177 = pneg %p94
        $region14: #{tpu_custom_call.1} parent=11 // pred_check_branch
          %179 = sbr.rel (%p177) target = $region16
        $region15: #{tpu_custom_call.1} parent=11 // pred_region
          %s181 = ssub.s32 4096, 4096
          %182 = vsyncadd [#allocation6], %s181
          %s183 = sshll.u32 [#allocation7], 4
          %s184 = int_to_ptr.vmem [resolvable:$true] %s183
          %189 = dma.hbm_to_vmem [thread:$0]  %s2, 4096, %s184, [#allocation6], 128, 128, 8
        $region16: #{tpu_custom_call.1} parent=11 // pred_fallthru
          _
        // Predicated region
        $region17: #{tpu_custom_call.1} parent=11 // pred_check
          %p190 = pneg %p115
        $region18: #{tpu_custom_call.1} parent=11 // pred_check_branch
          %192 = sbr.rel (%p190) target = $region20
        $region19: #{tpu_custom_call.1} parent=11 // pred_region
          %s194 = ssub.s32 4096, 4096
          %195 = vsyncadd [#allocation9], %s194
          %s196 = sshll.u32 [#allocation8], 4
          %s197 = int_to_ptr.vmem [resolvable:$true] %s196
          %202 = dma.hbm_to_vmem [thread:$0]  %s3, 4096, %s197, [#allocation9], 128, 128, 8
        $region20: #{tpu_custom_call.1} parent=11 // pred_fallthru
          _
        // Predicated region
        $region21: #{tpu_custom_call.1} parent=11 // pred_check
          %p203 = pneg %p136
        $region22: #{tpu_custom_call.1} parent=11 // pred_check_branch
          %205 = sbr.rel (%p203) target = $region24
        $region23: #{tpu_custom_call.1} parent=11 // pred_region
          _
        $region24: #{tpu_custom_call.1} parent=11 // pred_fallthru
          _
      $region12: #{tpu_custom_call.1} parent=5 // pred_fallthru
        _
      %p206 = scmp.lt.s32.totalorder %s21, 2
      // Predicated region
      $region25: #{tpu_custom_call.1} parent=5 // pred_check
        %p207 = pneg %p206
      $region26: #{tpu_custom_call.1} parent=5 // pred_check_branch
        %209 = sbr.rel (%p207) target = $region28
      $region27: #{tpu_custom_call.1} parent=5 // pred_region
        // Predicated region
        $region29: #{tpu_custom_call.1} parent=27 // pred_check
          %p210 = pneg %p41
        $region30: #{tpu_custom_call.1} parent=27 // pred_check_branch
          %212 = sbr.rel (%p210) target = $region32
        $region31: #{tpu_custom_call.1} parent=27 // pred_region
          %s213 = sand.u32 %s31, 1
          %s214 = scalar_lea.sflag [#allocation3], %s213
          %s215 = sand.u32 %s31, 1
          %s216 = smul.addr %s215, 256
          %s217 = scalar_lea.vmem [#allocation2], %s216
          %s218 = smul.u32 16, %s21
          %s220 = ssub.s32 4096, 4096
          %221 = vsyncadd %s214, %s220
          %s222 = smul.addr %s218, 2
          %s223 = smul.addr %s222, 128
          %s224 = scalar_lea.hbm %s0, %s223
          %s225 = sshll.u32 %s217, 4
          %s226 = int_to_ptr.vmem [resolvable:$true] %s225
          %231 = dma.hbm_to_vmem [thread:$0]  %s224, 4096, %s226, %s214, 256, 256, 16
        $region32: #{tpu_custom_call.1} parent=27 // pred_fallthru
          _
        // Predicated region
        $region33: #{tpu_custom_call.1} parent=27 // pred_check
          %p232 = pneg %p67
        $region34: #{tpu_custom_call.1} parent=27 // pred_check_branch
          %234 = sbr.rel (%p232) target = $region36
        $region35: #{tpu_custom_call.1} parent=27 // pred_region
          %s235 = sand.u32 %s21, 1
          %s236 = scalar_lea.sflag [#allocation6], %s235
          %s237 = sand.u32 %s57, 1
          %s238 = smul.addr %s237, 256
          %s239 = scalar_lea.vmem [#allocation5], %s238
          %s240 = smul.u32 16, %s21
          %s242 = ssub.s32 4096, 4096
          %243 = vsyncadd %s236, %s242
          %s244 = smul.addr %s240, 2
          %s245 = smul.addr %s244, 128
          %s246 = scalar_lea.hbm %s1, %s245
          %s247 = sshll.u32 %s239, 4
          %s248 = int_to_ptr.vmem [resolvable:$true] %s247
          %253 = dma.hbm_to_vmem [thread:$0]  %s246, 4096, %s248, %s236, 256, 256, 16
        $region36: #{tpu_custom_call.1} parent=27 // pred_fallthru
          _
      $region28: #{tpu_custom_call.1} parent=5 // pred_fallthru
        _
      %p254 = scmp.le.s32.totalorder 1, %s21
      %p255 = scmp.lt.s32.totalorder %s21, 3
      %p256 = pnand %p254, %p255
      %p257 = pneg %p256
      // Predicated region
      $region37: #{tpu_custom_call.1} parent=5 // pred_check
        _
      $region38: #{tpu_custom_call.1} parent=5 // pred_check_branch
        %259 = sbr.rel (%p256) target = $region40
      $region39: #{tpu_custom_call.1} parent=5 // pred_region
        %s260 = ssub.s32 %s21, 1
        %s261 = sand.u32 %s34, 1
        %s262 = scalar_lea.sflag [#allocation3], %s261
        %s263 = sand.u32 %s34, 1
        %s264 = smul.addr %s263, 256
        %s265 = scalar_lea.vmem [#allocation2], %s264
        // Predicated region
        $region41: #{tpu_custom_call.1} parent=39 // pred_check
          %p266 = pneg %p47
        $region42: #{tpu_custom_call.1} parent=39 // pred_check_branch
          %268 = sbr.rel (%p266) target = $region44
        $region43: #{tpu_custom_call.1} parent=39 // pred_region
          %269 = dma.done %s262, 4096
        $region44: #{tpu_custom_call.1} parent=39 // pred_fallthru
          _
        %s270 = sand.u32 %s26, 1
        %s271 = scalar_lea.sflag [#allocation6], %s270
        %s272 = sand.u32 %s60, 1
        %s273 = smul.addr %s272, 256
        %s274 = scalar_lea.vmem [#allocation5], %s273
        // Predicated region
        $region45: #{tpu_custom_call.1} parent=39 // pred_check
          %p275 = pneg %p73
        $region46: #{tpu_custom_call.1} parent=39 // pred_check_branch
          %277 = sbr.rel (%p275) target = $region48
        $region47: #{tpu_custom_call.1} parent=39 // pred_region
          %278 = dma.done %s271, 4096
        $region48: #{tpu_custom_call.1} parent=39 // pred_fallthru
          _
        // Predicated region
        $region49: #{tpu_custom_call.1} parent=39 // pred_check
          %p279 = pneg %p94
        $region50: #{tpu_custom_call.1} parent=39 // pred_check_branch
          %281 = sbr.rel (%p279) target = $region52
        $region51: #{tpu_custom_call.1} parent=39 // pred_region
          %282 = dma.done [#allocation6], 4096
        $region52: #{tpu_custom_call.1} parent=39 // pred_fallthru
          _
        // Predicated region
        $region53: #{tpu_custom_call.1} parent=39 // pred_check
          %p283 = pneg %p115
        $region54: #{tpu_custom_call.1} parent=39 // pred_check_branch
          %285 = sbr.rel (%p283) target = $region56
        $region55: #{tpu_custom_call.1} parent=39 // pred_region
          %286 = dma.done [#allocation9], 4096
        $region56: #{tpu_custom_call.1} parent=39 // pred_fallthru
          _
        %s287 = sand.u32 %s34, 1
        %s288 = scalar_lea.sflag [#allocation3], %s287
        %s289 = sand.u32 %s34, 1
        %s290 = smul.addr %s289, 256
        %s291 = scalar_lea.vmem [#allocation2], %s290
        %p292 = pneg %p47
        %p293 = pneg %p44
        %s294 = sand.u32 %s26, 1
        %s295 = scalar_lea.sflag [#allocation6], %s294
        %s296 = sand.u32 %s60, 1
        %s297 = smul.addr %s296, 256
        %s298 = scalar_lea.vmem [#allocation5], %s297
        %p299 = pneg %p73
        %p300 = pneg %p70
        %p301 = pneg %p94
        %p302 = pneg %p91
        %p303 = pneg %p115
        %p304 = pneg %p112
        %p305 = pneg %p136
        %p306 = pneg %p133
        %p307 = pneg %p162
        %p308 = pneg %p159
        %s309 = sand.u32 %s149, 1
        %s310 = scalar_lea.sflag [#allocation4], %s309
        %s311 = sand.u32 %s149, 1
        %s312 = smul.addr %s311, 256
        %s313 = scalar_lea.vmem [#allocation10], %s312
        %s314 = smul.u32 16, %s26
        %s315 = smul.u32 16, %s26
        %s316 = smul.u32 16, %s26
        %v317 = vld [vmem:[%s265] sm:$0xff]
        %v318 = vld [vmem:[%s265 + $0x8] sm:$0xff]
        %v319 = vld [vmem:[%s265 + $0x10] sm:$0xff]
        %v320 = vld [vmem:[%s265 + $0x18] sm:$0xff]
        %v321 = vld [vmem:[%s265 + $0x20] sm:$0xff]
        %v322 = vld [vmem:[%s265 + $0x28] sm:$0xff]
        %v323 = vld [vmem:[%s265 + $0x30] sm:$0xff]
        %v324 = vld [vmem:[%s265 + $0x38] sm:$0xff]
        %v325 = vld [vmem:[%s265 + $0x40] sm:$0xff]
        %v326 = vld [vmem:[%s265 + $0x48] sm:$0xff]
        %v327 = vld [vmem:[%s265 + $0x50] sm:$0xff]
        %v328 = vld [vmem:[%s265 + $0x58] sm:$0xff]
        %v329 = vld [vmem:[%s265 + $0x60] sm:$0xff]
        %v330 = vld [vmem:[%s265 + $0x68] sm:$0xff]
        %v331 = vld [vmem:[%s265 + $0x70] sm:$0xff]
        %v332 = vld [vmem:[%s265 + $0x78] sm:$0xff]
        %v333 = vld [vmem:[%s265 + $0x80] sm:$0xff]
        %v334 = vld [vmem:[%s265 + $0x88] sm:$0xff]
        %v335 = vld [vmem:[%s265 + $0x90] sm:$0xff]
        %v336 = vld [vmem:[%s265 + $0x98] sm:$0xff]
        %v337 = vld [vmem:[%s265 + $0xa0] sm:$0xff]
        %v338 = vld [vmem:[%s265 + $0xa8] sm:$0xff]
        %v339 = vld [vmem:[%s265 + $0xb0] sm:$0xff]
        %v340 = vld [vmem:[%s265 + $0xb8] sm:$0xff]
        %v341 = vld [vmem:[%s265 + $0xc0] sm:$0xff]
        %v342 = vld [vmem:[%s265 + $0xc8] sm:$0xff]
        %v343 = vld [vmem:[%s265 + $0xd0] sm:$0xff]
        %v344 = vld [vmem:[%s265 + $0xd8] sm:$0xff]
        %v345 = vld [vmem:[%s265 + $0xe0] sm:$0xff]
        %v346 = vld [vmem:[%s265 + $0xe8] sm:$0xff]
        %v347 = vld [vmem:[%s265 + $0xf0] sm:$0xff]
        %v348 = vld [vmem:[%s265 + $0xf8] sm:$0xff]
        %v349 = vld [vmem:[#allocation7] sm:$0xff]
        %v350 = vld [vmem:[#allocation7 + $0x8] sm:$0xff]
        %v351 = vld [vmem:[#allocation7 + $0x10] sm:$0xff]
        %v352 = vld [vmem:[#allocation7 + $0x18] sm:$0xff]
        %v353 = vld [vmem:[#allocation7 + $0x20] sm:$0xff]
        %v354 = vld [vmem:[#allocation7 + $0x28] sm:$0xff]
        %v355 = vld [vmem:[#allocation7 + $0x30] sm:$0xff]
        %v356 = vld [vmem:[#allocation7 + $0x38] sm:$0xff]
        %v357 = vld [vmem:[#allocation7 + $0x40] sm:$0xff]
        %v358 = vld [vmem:[#allocation7 + $0x48] sm:$0xff]
        %v359 = vld [vmem:[#allocation7 + $0x50] sm:$0xff]
        %v360 = vld [vmem:[#allocation7 + $0x58] sm:$0xff]
        %v361 = vld [vmem:[#allocation7 + $0x60] sm:$0xff]
        %v362 = vld [vmem:[#allocation7 + $0x68] sm:$0xff]
        %v363 = vld [vmem:[#allocation7 + $0x70] sm:$0xff]
        %v364 = vld [vmem:[#allocation7 + $0x78] sm:$0xff]
        %v365 = vld [vmem:[#allocation7 + $0x80] sm:$0xff]
        %v366 = vld [vmem:[#allocation7 + $0x88] sm:$0xff]
        %v367 = vld [vmem:[#allocation7 + $0x90] sm:$0xff]
        %v368 = vld [vmem:[#allocation7 + $0x98] sm:$0xff]
        %v369 = vld [vmem:[#allocation7 + $0xa0] sm:$0xff]
        %v370 = vld [vmem:[#allocation7 + $0xa8] sm:$0xff]
        %v371 = vld [vmem:[#allocation7 + $0xb0] sm:$0xff]
        %v372 = vld [vmem:[#allocation7 + $0xb8] sm:$0xff]
        %v373 = vld [vmem:[#allocation7 + $0xc0] sm:$0xff]
        %v374 = vld [vmem:[#allocation7 + $0xc8] sm:$0xff]
        %v375 = vld [vmem:[#allocation7 + $0xd0] sm:$0xff]
        %v376 = vld [vmem:[#allocation7 + $0xd8] sm:$0xff]
        %v377 = vld [vmem:[#allocation7 + $0xe0] sm:$0xff]
        %v378 = vld [vmem:[#allocation7 + $0xe8] sm:$0xff]
        %v379 = vld [vmem:[#allocation7 + $0xf0] sm:$0xff]
        %v380 = vld [vmem:[#allocation7 + $0xf8] sm:$0xff]
        %381 = vmatprep.subr.mxu0 0.0
        %382 = vmatpush1.msra.mxu0 %v349
        %383 = vmatprep.subr.mxu0 0.0
        %384 = vmatpush1.msra.mxu0 %v350
        %385 = vmatprep.subr.mxu0 0.0
        %386 = vmatpush1.msra.mxu0 %v351
        %387 = vmatprep.subr.mxu0 0.0
        %388 = vmatpush1.msra.mxu0 %v352
        %389 = vmatprep.subr.mxu0 0.0
        %390 = vmatpush1.msra.mxu0 %v353
        %391 = vmatprep.subr.mxu0 0.0
        %392 = vmatpush1.msra.mxu0 %v354
        %393 = vmatprep.subr.mxu0 0.0
        %394 = vmatpush1.msra.mxu0 %v355
        %395 = vmatprep.subr.mxu0 0.0
        %396 = vmatpush1.msra.mxu0 %v356
        %397 = vmatprep.subr.mxu0 0.0
        %398 = vmatpush1.msra.mxu0 %v357
        %399 = vmatprep.subr.mxu0 0.0
        %400 = vmatpush1.msra.mxu0 %v358
        %401 = vmatprep.subr.mxu0 0.0
        %402 = vmatpush1.msra.mxu0 %v359
        %403 = vmatprep.subr.mxu0 0.0
        %404 = vmatpush1.msra.mxu0 %v360
        %405 = vmatprep.subr.mxu0 0.0
        %406 = vmatpush1.msra.mxu0 %v361
        %407 = vmatprep.subr.mxu0 0.0
        %408 = vmatpush1.msra.mxu0 %v362
        %409 = vmatprep.subr.mxu0 0.0
        %410 = vmatpush1.msra.mxu0 %v363
        %411 = vmatprep.subr.mxu0 0.0
        %412 = vmatpush1.msra.mxu0 %v364
        %413 = vmatprep.subr.mxu0 0.0
        %414 = vmatpush1.msra.mxu0 %v365
        %415 = vmatprep.subr.mxu0 0.0
        %416 = vmatpush1.msra.mxu0 %v366
        %417 = vmatprep.subr.mxu0 0.0
        %418 = vmatpush1.msra.mxu0 %v367
        %419 = vmatprep.subr.mxu0 0.0
        %420 = vmatpush1.msra.mxu0 %v368
        %421 = vmatprep.subr.mxu0 0.0
        %422 = vmatpush1.msra.mxu0 %v369
        %423 = vmatprep.subr.mxu0 0.0
        %424 = vmatpush1.msra.mxu0 %v370
        %425 = vmatprep.subr.mxu0 0.0
        %426 = vmatpush1.msra.mxu0 %v371
        %427 = vmatprep.subr.mxu0 0.0
        %428 = vmatpush1.msra.mxu0 %v372
        %429 = vmatprep.subr.mxu0 0.0
        %430 = vmatpush1.msra.mxu0 %v373
        %431 = vmatprep.subr.mxu0 0.0
        %432 = vmatpush1.msra.mxu0 %v374
        %433 = vmatprep.subr.mxu0 0.0
        %434 = vmatpush1.msra.mxu0 %v375
        %435 = vmatprep.subr.mxu0 0.0
        %436 = vmatpush1.msra.mxu0 %v376
        %437 = vmatprep.subr.mxu0 0.0
        %438 = vmatpush1.msra.mxu0 %v377
        %439 = vmatprep.subr.mxu0 0.0
        %440 = vmatpush1.msra.mxu0 %v378
        %441 = vmatprep.subr.mxu0 0.0
        %442 = vmatpush1.msra.mxu0 %v379
        %443 = vmatprep.subr.mxu0 0.0
        %444 = vmatpush1.msra.mxu0 %v380
        %445 = vmatprep.mubr.f32.mxu0 %v318
        %446 = vmatmul.mubr.f32.gmra.mrb[0].mxu0 %v317
        %v447 = vpop.f32.mrb[0].mxu0
        %v448 = vadd.f32 0.0, %v447
        %v449 = vpop.f32.mrb[0].mxu0
        %450 = vmatprep.mubr.f32.mxu0 %v320
        %451 = vmatmul.mubr.f32.gmra.mrb[0].mxu0 %v319
        %v452 = vpop.f32.mrb[0].mxu0
        %v453 = vadd.f32 0.0, %v452
        %v454 = vpop.f32.mrb[0].mxu0
        %455 = vmatprep.mubr.f32.mxu0 %v322
        %456 = vmatmul.mubr.f32.gmra.mrb[0].mxu0 %v321
        %v457 = vpop.f32.mrb[0].mxu0
        %v458 = vadd.f32 0.0, %v457
        %v459 = vpop.f32.mrb[0].mxu0
        %460 = vmatprep.mubr.f32.mxu0 %v324
        %461 = vmatmul.mubr.f32.gmra.mrb[0].mxu0 %v323
        %v462 = vpop.f32.mrb[0].mxu0
        %v463 = vadd.f32 0.0, %v462
        %v464 = vpop.f32.mrb[0].mxu0
        %465 = vmatprep.mubr.f32.mxu0 %v326
        %466 = vmatmul.mubr.f32.gmra.mrb[0].mxu0 %v325
        %v467 = vpop.f32.mrb[0].mxu0
        %v468 = vadd.f32 0.0, %v467
        %v469 = vpop.f32.mrb[0].mxu0
        %470 = vmatprep.mubr.f32.mxu0 %v328
        %471 = vmatmul.mubr.f32.gmra.mrb[0].mxu0 %v327
        %v472 = vpop.f32.mrb[0].mxu0
        %v473 = vadd.f32 0.0, %v472
        %v474 = vpop.f32.mrb[0].mxu0
        %475 = vmatprep.mubr.f32.mxu0 %v330
        %476 = vmatmul.mubr.f32.gmra.mrb[0].mxu0 %v329
        %v477 = vpop.f32.mrb[0].mxu0
        %v478 = vadd.f32 0.0, %v477
        %v479 = vpop.f32.mrb[0].mxu0
        %480 = vmatprep.mubr.f32.mxu0 %v332
        %481 = vmatmul.mubr.f32.gmra.mrb[0].mxu0 %v331
        %v482 = vpop.f32.mrb[0].mxu0
        %v483 = vadd.f32 0.0, %v482
        %v484 = vpop.f32.mrb[0].mxu0
        %485 = vmatprep.mubr.f32.mxu0 %v334
        %486 = vmatmul.mubr.f32.gmra.mrb[0].mxu0 %v333
        %v487 = vpop.f32.mrb[0].mxu0
        %v488 = vadd.f32 0.0, %v487
        %v489 = vpop.f32.mrb[0].mxu0
        %490 = vmatprep.mubr.f32.mxu0 %v336
        %491 = vmatmul.mubr.f32.gmra.mrb[0].mxu0 %v335
        %v492 = vpop.f32.mrb[0].mxu0
        %v493 = vadd.f32 0.0, %v492
        %v494 = vpop.f32.mrb[0].mxu0
        %495 = vmatprep.mubr.f32.mxu0 %v338
        %496 = vmatmul.mubr.f32.gmra.mrb[0].mxu0 %v337
        %v497 = vpop.f32.mrb[0].mxu0
        %v498 = vadd.f32 0.0, %v497
        %v499 = vpop.f32.mrb[0].mxu0
        %500 = vmatprep.mubr.f32.mxu0 %v340
        %501 = vmatmul.mubr.f32.gmra.mrb[0].mxu0 %v339
        %v502 = vpop.f32.mrb[0].mxu0
        %v503 = vadd.f32 0.0, %v502
        %v504 = vpop.f32.mrb[0].mxu0
        %505 = vmatprep.mubr.f32.mxu0 %v342
        %506 = vmatmul.mubr.f32.gmra.mrb[0].mxu0 %v341
        %v507 = vpop.f32.mrb[0].mxu0
        %v508 = vadd.f32 0.0, %v507
        %v509 = vpop.f32.mrb[0].mxu0
        %510 = vmatprep.mubr.f32.mxu0 %v344
        %511 = vmatmul.mubr.f32.gmra.mrb[0].mxu0 %v343
        %v512 = vpop.f32.mrb[0].mxu0
        %v513 = vadd.f32 0.0, %v512
        %v514 = vpop.f32.mrb[0].mxu0
        %515 = vmatprep.mubr.f32.mxu0 %v346
        %516 = vmatmul.mubr.f32.gmra.mrb[0].mxu0 %v345
        %v517 = vpop.f32.mrb[0].mxu0
        %v518 = vadd.f32 0.0, %v517
        %v519 = vpop.f32.mrb[0].mxu0
        %520 = vmatprep.mubr.f32.mxu0 %v348
        %521 = vmatmul.mubr.f32.gmra.mrb[0].mxu0 %v347
        %v522 = vpop.f32.mrb[0].mxu0
        %v523 = vadd.f32 0.0, %v522
        %v524 = vpop.f32.mrb[0].mxu0
        %525 = vdwg.mxu0
        %v526 = vld [vmem:[%s274] sm:$0xff]
        %v527 = vld [vmem:[%s274 + $0x8] sm:$0xff]
        %v528 = vld [vmem:[%s274 + $0x10] sm:$0xff]
        %v529 = vld [vmem:[%s274 + $0x18] sm:$0xff]
        %v530 = vld [vmem:[%s274 + $0x20] sm:$0xff]
        %v531 = vld [vmem:[%s274 + $0x28] sm:$0xff]
        %v532 = vld [vmem:[%s274 + $0x30] sm:$0xff]
        %v533 = vld [vmem:[%s274 + $0x38] sm:$0xff]
        %v534 = vld [vmem:[%s274 + $0x40] sm:$0xff]
        %v535 = vld [vmem:[%s274 + $0x48] sm:$0xff]
        %v536 = vld [vmem:[%s274 + $0x50] sm:$0xff]
        %v537 = vld [vmem:[%s274 + $0x58] sm:$0xff]
        %v538 = vld [vmem:[%s274 + $0x60] sm:$0xff]
        %v539 = vld [vmem:[%s274 + $0x68] sm:$0xff]
        %v540 = vld [vmem:[%s274 + $0x70] sm:$0xff]
        %v541 = vld [vmem:[%s274 + $0x78] sm:$0xff]
        %v542 = vld [vmem:[%s274 + $0x80] sm:$0xff]
        %v543 = vld [vmem:[%s274 + $0x88] sm:$0xff]
        %v544 = vld [vmem:[%s274 + $0x90] sm:$0xff]
        %v545 = vld [vmem:[%s274 + $0x98] sm:$0xff]
        %v546 = vld [vmem:[%s274 + $0xa0] sm:$0xff]
        %v547 = vld [vmem:[%s274 + $0xa8] sm:$0xff]
        %v548 = vld [vmem:[%s274 + $0xb0] sm:$0xff]
        %v549 = vld [vmem:[%s274 + $0xb8] sm:$0xff]
        %v550 = vld [vmem:[%s274 + $0xc0] sm:$0xff]
        %v551 = vld [vmem:[%s274 + $0xc8] sm:$0xff]
        %v552 = vld [vmem:[%s274 + $0xd0] sm:$0xff]
        %v553 = vld [vmem:[%s274 + $0xd8] sm:$0xff]
        %v554 = vld [vmem:[%s274 + $0xe0] sm:$0xff]
        %v555 = vld [vmem:[%s274 + $0xe8] sm:$0xff]
        %v556 = vld [vmem:[%s274 + $0xf0] sm:$0xff]
        %v557 = vld [vmem:[%s274 + $0xf8] sm:$0xff]
        %v558 = vld [vmem:[#allocation8] sm:$0xff]
        %v559 = vld [vmem:[#allocation8 + $0x8] sm:$0xff]
        %v560 = vld [vmem:[#allocation8 + $0x10] sm:$0xff]
        %v561 = vld [vmem:[#allocation8 + $0x18] sm:$0xff]
        %v562 = vld [vmem:[#allocation8 + $0x20] sm:$0xff]
        %v563 = vld [vmem:[#allocation8 + $0x28] sm:$0xff]
        %v564 = vld [vmem:[#allocation8 + $0x30] sm:$0xff]
        %v565 = vld [vmem:[#allocation8 + $0x38] sm:$0xff]
        %v566 = vld [vmem:[#allocation8 + $0x40] sm:$0xff]
        %v567 = vld [vmem:[#allocation8 + $0x48] sm:$0xff]
        %v568 = vld [vmem:[#allocation8 + $0x50] sm:$0xff]
        %v569 = vld [vmem:[#allocation8 + $0x58] sm:$0xff]
        %v570 = vld [vmem:[#allocation8 + $0x60] sm:$0xff]
        %v571 = vld [vmem:[#allocation8 + $0x68] sm:$0xff]
        %v572 = vld [vmem:[#allocation8 + $0x70] sm:$0xff]
        %v573 = vld [vmem:[#allocation8 + $0x78] sm:$0xff]
        %v574 = vld [vmem:[#allocation8 + $0x80] sm:$0xff]
        %v575 = vld [vmem:[#allocation8 + $0x88] sm:$0xff]
        %v576 = vld [vmem:[#allocation8 + $0x90] sm:$0xff]
        %v577 = vld [vmem:[#allocation8 + $0x98] sm:$0xff]
        %v578 = vld [vmem:[#allocation8 + $0xa0] sm:$0xff]
        %v579 = vld [vmem:[#allocation8 + $0xa8] sm:$0xff]
        %v580 = vld [vmem:[#allocation8 + $0xb0] sm:$0xff]
        %v581 = vld [vmem:[#allocation8 + $0xb8] sm:$0xff]
        %v582 = vld [vmem:[#allocation8 + $0xc0] sm:$0xff]
        %v583 = vld [vmem:[#allocation8 + $0xc8] sm:$0xff]
        %v584 = vld [vmem:[#allocation8 + $0xd0] sm:$0xff]
        %v585 = vld [vmem:[#allocation8 + $0xd8] sm:$0xff]
        %v586 = vld [vmem:[#allocation8 + $0xe0] sm:$0xff]
        %v587 = vld [vmem:[#allocation8 + $0xe8] sm:$0xff]
        %v588 = vld [vmem:[#allocation8 + $0xf0] sm:$0xff]
        %v589 = vld [vmem:[#allocation8 + $0xf8] sm:$0xff]
        %590 = vmatprep.subr.mxu0 0.0
        %591 = vmatpush1.msra.mxu0 %v558
        %592 = vmatprep.subr.mxu0 0.0
        %593 = vmatpush1.msra.mxu0 %v559
        %594 = vmatprep.subr.mxu0 0.0
        %595 = vmatpush1.msra.mxu0 %v560
        %596 = vmatprep.subr.mxu0 0.0
        %597 = vmatpush1.msra.mxu0 %v561
        %598 = vmatprep.subr.mxu0 0.0
        %599 = vmatpush1.msra.mxu0 %v562
        %600 = vmatprep.subr.mxu0 0.0
        %601 = vmatpush1.msra.mxu0 %v563
        %602 = vmatprep.subr.mxu0 0.0
        %603 = vmatpush1.msra.mxu0 %v564
        %604 = vmatprep.subr.mxu0 0.0
        %605 = vmatpush1.msra.mxu0 %v565
        %606 = vmatprep.subr.mxu0 0.0
        %607 = vmatpush1.msra.mxu0 %v566
        %608 = vmatprep.subr.mxu0 0.0
        %609 = vmatpush1.msra.mxu0 %v567
        %610 = vmatprep.subr.mxu0 0.0
        %611 = vmatpush1.msra.mxu0 %v568
        %612 = vmatprep.subr.mxu0 0.0
        %613 = vmatpush1.msra.mxu0 %v569
        %614 = vmatprep.subr.mxu0 0.0
        %615 = vmatpush1.msra.mxu0 %v570
        %616 = vmatprep.subr.mxu0 0.0
        %617 = vmatpush1.msra.mxu0 %v571
        %618 = vmatprep.subr.mxu0 0.0
        %619 = vmatpush1.msra.mxu0 %v572
        %620 = vmatprep.subr.mxu0 0.0
        %621 = vmatpush1.msra.mxu0 %v573
        %622 = vmatprep.subr.mxu0 0.0
        %623 = vmatpush1.msra.mxu0 %v574
        %624 = vmatprep.subr.mxu0 0.0
        %625 = vmatpush1.msra.mxu0 %v575
        %626 = vmatprep.subr.mxu0 0.0
        %627 = vmatpush1.msra.mxu0 %v576
        %628 = vmatprep.subr.mxu0 0.0
        %629 = vmatpush1.msra.mxu0 %v577
        %630 = vmatprep.subr.mxu0 0.0
        %631 = vmatpush1.msra.mxu0 %v578
        %632 = vmatprep.subr.mxu0 0.0
        %633 = vmatpush1.msra.mxu0 %v579
        %634 = vmatprep.subr.mxu0 0.0
        %635 = vmatpush1.msra.mxu0 %v580
        %636 = vmatprep.subr.mxu0 0.0
        %637 = vmatpush1.msra.mxu0 %v581
        %638 = vmatprep.subr.mxu0 0.0
        %639 = vmatpush1.msra.mxu0 %v582
        %640 = vmatprep.subr.mxu0 0.0
        %641 = vmatpush1.msra.mxu0 %v583
        %642 = vmatprep.subr.mxu0 0.0
        %643 = vmatpush1.msra.mxu0 %v584
        %644 = vmatprep.subr.mxu0 0.0
        %645 = vmatpush1.msra.mxu0 %v585
        %646 = vmatprep.subr.mxu0 0.0
        %647 = vmatpush1.msra.mxu0 %v586
        %648 = vmatprep.subr.mxu0 0.0
        %649 = vmatpush1.msra.mxu0 %v587
        %650 = vmatprep.subr.mxu0 0.0
        %651 = vmatpush1.msra.mxu0 %v588
        %652 = vmatprep.subr.mxu0 0.0
        %653 = vmatpush1.msra.mxu0 %v589
        %654 = vmatprep.mubr.f32.mxu0 %v527
        %655 = vmatmul.mubr.f32.gmra.mrb[0].mxu0 %v526
        %v656 = vpop.f32.mrb[0].mxu0
        %v657 = vadd.f32 0.0, %v656
        %v658 = vpop.f32.mrb[0].mxu0
        %659 = vmatprep.mubr.f32.mxu0 %v529
        %660 = vmatmul.mubr.f32.gmra.mrb[0].mxu0 %v528
        %v661 = vpop.f32.mrb[0].mxu0
        %v662 = vadd.f32 0.0, %v661
        %v663 = vpop.f32.mrb[0].mxu0
        %664 = vmatprep.mubr.f32.mxu0 %v531
        %665 = vmatmul.mubr.f32.gmra.mrb[0].mxu0 %v530
        %v666 = vpop.f32.mrb[0].mxu0
        %v667 = vadd.f32 0.0, %v666
        %v668 = vpop.f32.mrb[0].mxu0
        %669 = vmatprep.mubr.f32.mxu0 %v533
        %670 = vmatmul.mubr.f32.gmra.mrb[0].mxu0 %v532
        %v671 = vpop.f32.mrb[0].mxu0
        %v672 = vadd.f32 0.0, %v671
        %v673 = vpop.f32.mrb[0].mxu0
        %674 = vmatprep.mubr.f32.mxu0 %v535
        %675 = vmatmul.mubr.f32.gmra.mrb[0].mxu0 %v534
        %v676 = vpop.f32.mrb[0].mxu0
        %v677 = vadd.f32 0.0, %v676
        %v678 = vpop.f32.mrb[0].mxu0
        %679 = vmatprep.mubr.f32.mxu0 %v537
        %680 = vmatmul.mubr.f32.gmra.mrb[0].mxu0 %v536
        %v681 = vpop.f32.mrb[0].mxu0
        %v682 = vadd.f32 0.0, %v681
        %v683 = vpop.f32.mrb[0].mxu0
        %684 = vmatprep.mubr.f32.mxu0 %v539
        %685 = vmatmul.mubr.f32.gmra.mrb[0].mxu0 %v538
        %v686 = vpop.f32.mrb[0].mxu0
        %v687 = vadd.f32 0.0, %v686
        %v688 = vpop.f32.mrb[0].mxu0
        %689 = vmatprep.mubr.f32.mxu0 %v541
        %690 = vmatmul.mubr.f32.gmra.mrb[0].mxu0 %v540
        %v691 = vpop.f32.mrb[0].mxu0
        %v692 = vadd.f32 0.0, %v691
        %v693 = vpop.f32.mrb[0].mxu0
        %694 = vmatprep.mubr.f32.mxu0 %v543
        %695 = vmatmul.mubr.f32.gmra.mrb[0].mxu0 %v542
        %v696 = vpop.f32.mrb[0].mxu0
        %v697 = vadd.f32 0.0, %v696
        %v698 = vpop.f32.mrb[0].mxu0
        %699 = vmatprep.mubr.f32.mxu0 %v545
        %700 = vmatmul.mubr.f32.gmra.mrb[0].mxu0 %v544
        %v701 = vpop.f32.mrb[0].mxu0
        %v702 = vadd.f32 0.0, %v701
        %v703 = vpop.f32.mrb[0].mxu0
        %704 = vmatprep.mubr.f32.mxu0 %v547
        %705 = vmatmul.mubr.f32.gmra.mrb[0].mxu0 %v546
        %v706 = vpop.f32.mrb[0].mxu0
        %v707 = vadd.f32 0.0, %v706
        %v708 = vpop.f32.mrb[0].mxu0
        %709 = vmatprep.mubr.f32.mxu0 %v549
        %710 = vmatmul.mubr.f32.gmra.mrb[0].mxu0 %v548
        %v711 = vpop.f32.mrb[0].mxu0
        %v712 = vadd.f32 0.0, %v711
        %v713 = vpop.f32.mrb[0].mxu0
        %714 = vmatprep.mubr.f32.mxu0 %v551
        %715 = vmatmul.mubr.f32.gmra.mrb[0].mxu0 %v550
        %v716 = vpop.f32.mrb[0].mxu0
        %v717 = vadd.f32 0.0, %v716
        %v718 = vpop.f32.mrb[0].mxu0
        %719 = vmatprep.mubr.f32.mxu0 %v553
        %720 = vmatmul.mubr.f32.gmra.mrb[0].mxu0 %v552
        %v721 = vpop.f32.mrb[0].mxu0
        %v722 = vadd.f32 0.0, %v721
        %v723 = vpop.f32.mrb[0].mxu0
        %724 = vmatprep.mubr.f32.mxu0 %v555
        %725 = vmatmul.mubr.f32.gmra.mrb[0].mxu0 %v554
        %v726 = vpop.f32.mrb[0].mxu0
        %v727 = vadd.f32 0.0, %v726
        %v728 = vpop.f32.mrb[0].mxu0
        %729 = vmatprep.mubr.f32.mxu0 %v557
        %730 = vmatmul.mubr.f32.gmra.mrb[0].mxu0 %v556
        %v731 = vpop.f32.mrb[0].mxu0
        %v732 = vadd.f32 0.0, %v731
        %v733 = vpop.f32.mrb[0].mxu0
        %734 = vdwg.mxu0
        %v735 = vtanh.pop %v448
        %v736 = vtanh.pop %v453
        %v737 = vtanh.pop %v458
        %v738 = vtanh.pop %v463
        %v739 = vtanh.pop %v468
        %v740 = vtanh.pop %v473
        %v741 = vtanh.pop %v478
        %v742 = vtanh.pop %v483
        %v743 = vtanh.pop %v488
        %v744 = vtanh.pop %v493
        %v745 = vtanh.pop %v498
        %v746 = vtanh.pop %v503
        %v747 = vtanh.pop %v508
        %v748 = vtanh.pop %v513
        %v749 = vtanh.pop %v518
        %v750 = vtanh.pop %v523
        %v751 = vtanh.pop %v657
        %v752 = vtanh.pop %v662
        %v753 = vtanh.pop %v667
        %v754 = vtanh.pop %v672
        %v755 = vtanh.pop %v677
        %v756 = vtanh.pop %v682
        %v757 = vtanh.pop %v687
        %v758 = vtanh.pop %v692
        %v759 = vtanh.pop %v697
        %v760 = vtanh.pop %v702
        %v761 = vtanh.pop %v707
        %v762 = vtanh.pop %v712
        %v763 = vtanh.pop %v717
        %v764 = vtanh.pop %v722
        %v765 = vtanh.pop %v727
        %v766 = vtanh.pop %v732
        %v767 = vld [vmem:[%s4] sm:$0x1]
        %v769 = vlaneseq
        %v770 = vshrl.u32 %v769, 7
        %v771 = vsub.s32 0, %v770
        %v772 = vrot.slane %v767, %v771
        %v774 = vadd.f32 %v735, %v772
        %v775 = vadd.f32 %v736, %v772
        %v776 = vadd.f32 %v737, %v772
        %v777 = vadd.f32 %v738, %v772
        %v778 = vadd.f32 %v739, %v772
        %v779 = vadd.f32 %v740, %v772
        %v780 = vadd.f32 %v741, %v772
        %v781 = vadd.f32 %v742, %v772
        %v782 = vadd.f32 %v743, %v772
        %v783 = vadd.f32 %v744, %v772
        %v784 = vadd.f32 %v745, %v772
        %v785 = vadd.f32 %v746, %v772
        %v786 = vadd.f32 %v747, %v772
        %v787 = vadd.f32 %v748, %v772
        %v788 = vadd.f32 %v749, %v772
        %v789 = vadd.f32 %v750, %v772
        %v790 = vld [vmem:[%s4 + $0x1] sm:$0x1]
        %v792 = vlaneseq
        %v793 = vshrl.u32 %v792, 7
        %v794 = vsub.s32 0, %v793
        %v795 = vrot.slane %v790, %v794
        %v797 = vadd.f32 %v751, %v795
        %v798 = vadd.f32 %v752, %v795
        %v799 = vadd.f32 %v753, %v795
        %v800 = vadd.f32 %v754, %v795
        %v801 = vadd.f32 %v755, %v795
        %v802 = vadd.f32 %v756, %v795
        %v803 = vadd.f32 %v757, %v795
        %v804 = vadd.f32 %v758, %v795
        %v805 = vadd.f32 %v759, %v795
        %v806 = vadd.f32 %v760, %v795
        %v807 = vadd.f32 %v761, %v795
        %v808 = vadd.f32 %v762, %v795
        %v809 = vadd.f32 %v763, %v795
        %v810 = vadd.f32 %v764, %v795
        %v811 = vadd.f32 %v765, %v795
        %v812 = vadd.f32 %v766, %v795
        %813 = vst [vmem:[%s313] sm:$0xff] %v774
        %814 = vst [vmem:[%s313 + $0x10] sm:$0xff] %v775
        %815 = vst [vmem:[%s313 + $0x20] sm:$0xff] %v776
        %816 = vst [vmem:[%s313 + $0x30] sm:$0xff] %v777
        %817 = vst [vmem:[%s313 + $0x40] sm:$0xff] %v778
        %818 = vst [vmem:[%s313 + $0x50] sm:$0xff] %v779
        %819 = vst [vmem:[%s313 + $0x60] sm:$0xff] %v780
        %820 = vst [vmem:[%s313 + $0x70] sm:$0xff] %v781
        %821 = vst [vmem:[%s313 + $0x80] sm:$0xff] %v782
        %822 = vst [vmem:[%s313 + $0x90] sm:$0xff] %v783
        %823 = vst [vmem:[%s313 + $0xa0] sm:$0xff] %v784
        %824 = vst [vmem:[%s313 + $0xb0] sm:$0xff] %v785
        %825 = vst [vmem:[%s313 + $0xc0] sm:$0xff] %v786
        %826 = vst [vmem:[%s313 + $0xd0] sm:$0xff] %v787
        %827 = vst [vmem:[%s313 + $0xe0] sm:$0xff] %v788
        %828 = vst [vmem:[%s313 + $0xf0] sm:$0xff] %v789
        %829 = vst [vmem:[%s313 + $0x8] sm:$0xff] %v797
        %830 = vst [vmem:[%s313 + $0x18] sm:$0xff] %v798
        %831 = vst [vmem:[%s313 + $0x28] sm:$0xff] %v799
        %832 = vst [vmem:[%s313 + $0x38] sm:$0xff] %v800
        %833 = vst [vmem:[%s313 + $0x48] sm:$0xff] %v801
        %834 = vst [vmem:[%s313 + $0x58] sm:$0xff] %v802
        %835 = vst [vmem:[%s313 + $0x68] sm:$0xff] %v803
        %836 = vst [vmem:[%s313 + $0x78] sm:$0xff] %v804
        %837 = vst [vmem:[%s313 + $0x88] sm:$0xff] %v805
        %838 = vst [vmem:[%s313 + $0x98] sm:$0xff] %v806
        %839 = vst [vmem:[%s313 + $0xa8] sm:$0xff] %v807
        %840 = vst [vmem:[%s313 + $0xb8] sm:$0xff] %v808
        %841 = vst [vmem:[%s313 + $0xc8] sm:$0xff] %v809
        %842 = vst [vmem:[%s313 + $0xd8] sm:$0xff] %v810
        %843 = vst [vmem:[%s313 + $0xe8] sm:$0xff] %v811
        %844 = vst [vmem:[%s313 + $0xf8] sm:$0xff] %v812
        %s845 = sand.u32 %s149, 1
        %s846 = scalar_lea.sflag [#allocation4], %s845
        %s847 = sand.u32 %s149, 1
        %s848 = smul.addr %s847, 256
        %s849 = scalar_lea.vmem [#allocation10], %s848
        // Predicated region
        $region57: #{tpu_custom_call.1} parent=39 // pred_check
          %p850 = pneg %p159
        $region58: #{tpu_custom_call.1} parent=39 // pred_check_branch
          %852 = sbr.rel (%p850) target = $region60
        $region59: #{tpu_custom_call.1} parent=39 // pred_region
          %s853 = smul.u32 16, %s26
          %s855 = ssub.s32 4096, 4096
          %856 = vsyncadd %s846, %s855
          %s857 = smul.addr %s853, 2
          %s858 = smul.addr %s857, 128
          %s859 = scalar_lea.hbm %s5, %s858
          %s860 = sshll.u32 %s849, 4
          %s861 = int_to_ptr.vmem [resolvable:$true] %s860
          %866 = dma.vmem_to_hbm [thread:$0]  %s861, 4096, %s859, %s846, 256, 256, 16
        $region60: #{tpu_custom_call.1} parent=39 // pred_fallthru
          _
      $region40: #{tpu_custom_call.1} parent=5 // pred_fallthru
        _
      %p867 = scmp.le.s32.totalorder 2, %s21
      // Predicated region
      $region61: #{tpu_custom_call.1} parent=5 // pred_check
        %p868 = pneg %p867
      $region62: #{tpu_custom_call.1} parent=5 // pred_check_branch
        %870 = sbr.rel (%p868) target = $region64
      $region63: #{tpu_custom_call.1} parent=5 // pred_region
        %s871 = ssub.s32 %s21, 2
        // Predicated region
        $region65: #{tpu_custom_call.1} parent=63 // pred_check
          %p872 = pneg %p165
        $region66: #{tpu_custom_call.1} parent=63 // pred_check_branch
          %874 = sbr.rel (%p872) target = $region68
        $region67: #{tpu_custom_call.1} parent=63 // pred_region
          %s875 = sand.u32 %s150, 1
          %s876 = scalar_lea.sflag [#allocation4], %s875
          %s877 = sand.u32 %s150, 1
          %s878 = smul.addr %s877, 256
          %s879 = scalar_lea.vmem [#allocation10], %s878
          %880 = dma.done %s876, 4096
        $region68: #{tpu_custom_call.1} parent=63 // pred_fallthru
          _
      $region64: #{tpu_custom_call.1} parent=5 // pred_fallthru
        _
    $region6: #{tpu_custom_call.1} parent=1 // loop_footer
      %s25 = sadd.s32 1, %s21
    $region7: #{tpu_custom_call.1} parent=1 // loop_footer_branch
      %20 = sbr.rel target = $region3
    $region8: #{tpu_custom_call.1} parent=1 // loop_exit
      _
    %881 = vsyncpa [#allocation3], 1
    %s882 = scalar_lea.sflag [#allocation3], 1
    %883 = vsyncpa %s882, 1
    %884 = vsyncpa [#allocation6], 1
    %s885 = scalar_lea.sflag [#allocation6], 1
    %886 = vsyncpa %s885, 1
    %887 = vsyncpa [#allocation9], 1
    %888 = vsyncpa [#allocation4], 1
    %s889 = scalar_lea.sflag [#allocation4], 1
    %890 = vsyncpa %s889, 1

</llo_original>
